<compile_context>
chip_gen: v6e
topology: v6e:2x2x1
jax: 0.10.0
libtpu: 0.0.40
codegen_flags: <defaults>
</compile_context>

<pallas_src>
import functools

import jax
import jax.numpy as jnp
from jax.experimental import pallas as pl
from jax.experimental.pallas import tpu as pltpu


# ---------------------------------------------------------------------------
# 1-D bilinear interpolation matrix (align_corners=False); matches
# F.interpolate(..., mode="bilinear", antialias=False).
# ---------------------------------------------------------------------------
def bilinear_matrix(in_size: int, out_size: int, dtype=jnp.float32):
    scale = in_size / out_size
    dst = jnp.arange(out_size, dtype=jnp.float32)
    src = jnp.clip((dst + 0.5) * scale - 0.5, 0.0, float(in_size - 1))
    i0 = jnp.floor(src).astype(jnp.int32)
    i1 = jnp.minimum(i0 + 1, in_size - 1)
    frac = src - i0.astype(jnp.float32)
    rows = jnp.arange(out_size)
    m = jnp.zeros((out_size, in_size), dtype)
    m = m.at[rows, i0].add((1.0 - frac).astype(dtype))
    m = m.at[rows, i1].add(frac.astype(dtype))
    return m                                                 # (out_size, in_size)


# ---------------------------------------------------------------------------
# Generation-aware VMEM limit: <=40 MiB on v7x (64 MiB/TC), 64 MiB on v5e/v6e.
# ---------------------------------------------------------------------------
def _vmem_limit_bytes():
    try:
        cap = int(pltpu.get_tpu_info().vmem_capacity_bytes)
    except Exception:
        cap = 64 << 20                         # conservative (v7x per-TC) fallback
    return int(min(cap * 5 // 8, 64 << 20))


# ---------------------------------------------------------------------------
# Reduction-tile selection: lane-aligned, ~4096 target, weight block <=~4 MiB
# double-buffered, and F zero-padded to an exact tile multiple (never one
# giant single-step block for large non-divisible F).
# ---------------------------------------------------------------------------
def _pick_tile_f(F: int, k_pad: int, *, f_cap: int = 4096):
    f_cap = max(128, min(f_cap, ((4 << 20) // (2 * k_pad)) // 128 * 128))
    f128 = 128 * pl.cdiv(F, 128)
    steps = pl.cdiv(f128, f_cap)
    tile_f = 128 * pl.cdiv(f128 // 128, steps)
    return int(tile_f), int(tile_f * steps)     # (tile_f, F_pad)


# ---------------------------------------------------------------------------
# Static prep (run ONCE at model setup, not per forward call):
# fold resize into the head weight, pad K to 128 lanes, pad F to tile multiple.
# ---------------------------------------------------------------------------
def prepare_resized_linear(w, b, *, input_shape, target_size):
    """w: (C*H_out*W_out, K) in PyTorch Flatten (c, h_out, w_out) order; b: (K,)."""
    C, H_in, W_in = input_shape
    H_out, W_out = target_size
    K = w.shape[-1]
    K_pad = 128 * pl.cdiv(K, 128)                # lane-dense head output
    F = C * H_in * W_in

    wh = bilinear_matrix(H_in, H_out)            # (H_out, H_in)
    ww = bilinear_matrix(W_in, W_out)            # (W_out, W_in)
    w4 = w.reshape(C, H_out, W_out, K).astype(jnp.float32)
    # Fold the separable resize into the head weight (f32, once).
    w_folded = jnp.einsum("oh,pw,copk->chwk", wh, ww, w4).reshape(F, K)

    tile_f, F_pad = _pick_tile_f(F, int(K_pad))

    w_pad = jnp.zeros((F_pad, K_pad), jnp.float32)
    w_pad = w_pad.at[:F, :K].set(w_folded).astype(jnp.bfloat16)
    b_pad = jnp.zeros((1, K_pad), jnp.float32).at[0, :K].set(b.astype(jnp.float32))
    return w_pad, b_pad, int(K), int(F), int(F_pad), int(tile_f)


# ---------------------------------------------------------------------------
# Kernel: the whole forward as one tiled matmul with an f32 VMEM accumulator.
#   grid = (N blocks [parallel], F reduction steps [arbitrary, last])
# ---------------------------------------------------------------------------
def folded_forward_kernel(x_ref, w_ref, b_ref, o_ref, acc_ref):
    k = pl.program_id(1)

    @pl.when(k == 0)
    def _init():
        acc_ref[...] = jnp.zeros_like(acc_ref)

    acc_ref[...] += jnp.dot(x_ref[...], w_ref[...],
                            preferred_element_type=jnp.float32)

    @pl.when(k == pl.num_programs(1) - 1)
    def _finalize():
        # Bias add / cast kept in f32 (v5e has no bf16 VPU path); lane-dense store.
        o_ref[...] = (acc_ref[...] + b_ref[...]).astype(o_ref.dtype)


def folded_forward(x_flat, w_folded, b_pad, *, tile_n, tile_f):
    """x_flat: (N, F_pad) bf16, w_folded: (F_pad, K_pad) bf16 -> (N, K_pad) f32."""
    N, F_pad = x_flat.shape
    K_pad = w_folded.shape[1]
    return pl.pallas_call(
        folded_forward_kernel,
        out_shape=jax.ShapeDtypeStruct((N, K_pad), jnp.float32),
        grid_spec=pltpu.PrefetchScalarGridSpec(
            num_scalar_prefetch=0,
            grid=(N // tile_n, F_pad // tile_f),
            in_specs=[
                pl.BlockSpec((tile_n, tile_f), lambda n, k: (n, k)),
                pl.BlockSpec((tile_f, K_pad), lambda n, k: (k, 0)),
                pl.BlockSpec((1, K_pad), lambda n, k: (0, 0)),
            ],
            out_specs=pl.BlockSpec((tile_n, K_pad), lambda n, k: (n, 0)),
            scratch_shapes=[pltpu.VMEM((tile_n, K_pad), jnp.float32)],
        ),
        compiler_params=pltpu.CompilerParams(
            dimension_semantics=("parallel", "arbitrary"),
            vmem_limit_bytes=_vmem_limit_bytes(),
        ),
    )(x_flat, w_folded, b_pad)


# ---------------------------------------------------------------------------
# ResizedModel.forward: resize (folded) -> Flatten -> Linear, one Pallas call.
# ---------------------------------------------------------------------------
def resized_model_forward(x, w_folded_pad, b_pad, *, K, F, F_pad, tile_f):
    N = x.shape[0]
    x_flat = x.reshape(N, F).astype(jnp.bfloat16)           # PyTorch Flatten order
    if F_pad > F:
        x_flat = jnp.pad(x_flat, ((0, 0), (0, F_pad - F)))  # zero-pad reduction axis
    # Small batches use one N block; large batches split so both v7x TCs get work.
    tile_n = N if (N <= 256 or N % 256) else 256
    out = folded_forward(x_flat, w_folded_pad, b_pad, tile_n=tile_n, tile_f=tile_f)
    return out[:, :K]


if __name__ == "__main__":
    key = jax.random.PRNGKey(0)
    kx, kw, kb = jax.random.split(key, 3)

    N, C, H, W = 2, 4, 16, 16
    target_size = (8, 8)
    num_classes = 10
    feat_dim = C * target_size[0] * target_size[1]

    x = jax.random.normal(kx, (N, C, H, W), dtype=jnp.float32)
    w = jax.random.normal(kw, (feat_dim, num_classes), dtype=jnp.float32) * 0.02
    b = jax.random.normal(kb, (num_classes,), dtype=jnp.float32) * 0.02

    # Static prep, hoisted out of the per-call forward path (done once).
    w_folded_pad, b_pad, K, F, F_pad, tile_f = prepare_resized_linear(
        w, b, input_shape=(C, H, W), target_size=target_size)

    fwd = jax.jit(functools.partial(
        resized_model_forward, K=K, F=F, F_pad=F_pad, tile_f=tile_f))
    out = fwd(x, w_folded_pad, b_pad)
    jax.block_until_ready(out)

    # Pure-JAX f32 reference: explicit bilinear resize -> flatten -> linear.
    wh = bilinear_matrix(H, target_size[0])
    ww = bilinear_matrix(W, target_size[1])
    ref_resized = jnp.einsum("oh,nchw,pw->ncop", wh, x, ww)
    ref_out = ref_resized.reshape(N, -1) @ w + b

    assert out.shape == (N, num_classes)
    max_err = jnp.max(jnp.abs(out - ref_out))
    # bf16 operands / f32 accumulation -> loosened tolerance vs f32 reference.
    assert jnp.allclose(out, ref_out, atol=3e-2, rtol=3e-2), (
        f"mismatch vs reference, max abs err = {max_err}")
    print("KERNEL_OK")
</pallas_src>

<mosaic_0001>
module attributes {stable_mosaic.version = 11 : i64} {
  func.func @folded_forward_kernel(%arg0: i32, %arg1: i32, %arg2: memref<2x1024xbf16, #tpu.memory_space<vmem>>, %arg3: memref<1024x128xbf16, #tpu.memory_space<vmem>>, %arg4: memref<1x128xf32, #tpu.memory_space<vmem>>, %arg5: memref<2x128xf32, #tpu.memory_space<vmem>>, %arg6: memref<2x128xf32, #tpu.memory_space<vmem>>) attributes {dimension_semantics = [#tpu.dimension_semantics<parallel>, #tpu.dimension_semantics<arbitrary>], iteration_bounds = array<i64: 1, 1>, scalar_prefetch = 0 : i64, scratch_operands = 1 : i64, tpu.core_type = #tpu.core_type<tc>, window_params = [{transform_indices = @transform_0, window_bounds = array<i64: 2, 1024>}, {transform_indices = @transform_1, window_bounds = array<i64: 1024, 128>}, {pipeline_mode = #tpu.pipeline_mode<synchronous>, transform_indices = @transform_2, window_bounds = array<i64: 1, 128>}, {transform_indices = @transform_3, window_bounds = array<i64: 2, 128>}]} {
    %c0_i32 = arith.constant 0 : i32
    %0 = arith.cmpi eq, %arg1, %c0_i32 : i32
    %1 = arith.extui %0 : i1 to i32
    %c0_i32_0 = arith.constant 0 : i32
    %2 = arith.cmpi ne, %1, %c0_i32_0 : i32
    scf.if %2 {
      %cst_10 = arith.constant 0.000000e+00 : f32
      %12 = vector.broadcast %cst_10 : f32 to vector<2x128xf32>
      %c0_11 = arith.constant 0 : index
      %c0_12 = arith.constant 0 : index
      %13 = vector.load %arg6[%c0_11, %c0_12] : memref<2x128xf32, #tpu.memory_space<vmem>>, vector<2x128xf32>
      tpu.vector_store %arg6[%c0_11, %c0_12], %12 {strides = array<i32>} : memref<2x128xf32, #tpu.memory_space<vmem>>, vector<2x128xf32>,
    } else {
    }
    %c0 = arith.constant 0 : index
    %c0_1 = arith.constant 0 : index
    %3 = vector.load %arg6[%c0, %c0_1] : memref<2x128xf32, #tpu.memory_space<vmem>>, vector<2x128xf32>
    %c0_2 = arith.constant 0 : index
    %c0_3 = arith.constant 0 : index
    %4 = vector.load %arg2[%c0_2, %c0_3] : memref<2x1024xbf16, #tpu.memory_space<vmem>>, vector<2x1024xbf16>
    %c0_4 = arith.constant 0 : index
    %c0_5 = arith.constant 0 : index
    %5 = vector.load %arg3[%c0_4, %c0_5] : memref<1024x128xbf16, #tpu.memory_space<vmem>>, vector<1024x128xbf16>
    %cst = arith.constant dense<0.000000e+00> : vector<2x128xf32>
    %6 = tpu.matmul %4, %5, %cst {dimension_numbers = #tpu.dot_dimension_numbers<[1], [0], [0], [1], [0, 0, 1, 1], [], []>} : vector<2x1024xbf16>, vector<1024x128xbf16>, vector<2x128xf32> -> vector<2x128xf32>
    %7 = arith.addf %3, %6 : vector<2x128xf32>
    %c0_6 = arith.constant 0 : index
    %c0_7 = arith.constant 0 : index
    %8 = vector.load %arg6[%c0_6, %c0_7] : memref<2x128xf32, #tpu.memory_space<vmem>>, vector<2x128xf32>
    tpu.vector_store %arg6[%c0_6, %c0_7], %7 {strides = array<i32>} : memref<2x128xf32, #tpu.memory_space<vmem>>, vector<2x128xf32>,
    %c0_i32_8 = arith.constant 0 : i32
    %9 = arith.cmpi eq, %arg1, %c0_i32_8 : i32
    %10 = arith.extui %9 : i1 to i32
    %c0_i32_9 = arith.constant 0 : i32
    %11 = arith.cmpi ne, %10, %c0_i32_9 : i32
    scf.if %11 {
      %c0_10 = arith.constant 0 : index
      %c0_11 = arith.constant 0 : index
      %12 = vector.load %arg6[%c0_10, %c0_11] : memref<2x128xf32, #tpu.memory_space<vmem>>, vector<2x128xf32>
      %c0_12 = arith.constant 0 : index
      %c0_13 = arith.constant 0 : index
      %13 = vector.load %arg4[%c0_12, %c0_13] : memref<1x128xf32, #tpu.memory_space<vmem>>, vector<1x128xf32>
      %14 = vector.broadcast %13 : vector<1x128xf32> to vector<2x128xf32>
      %15 = arith.addf %12, %14 : vector<2x128xf32>
      %c0_14 = arith.constant 0 : index
      %c0_15 = arith.constant 0 : index
      %16 = vector.load %arg5[%c0_14, %c0_15] : memref<2x128xf32, #tpu.memory_space<vmem>>, vector<2x128xf32>
      tpu.vector_store %arg5[%c0_14, %c0_15], %15 {strides = array<i32>} : memref<2x128xf32, #tpu.memory_space<vmem>>, vector<2x128xf32>,
    } else {
    }
    return
  }
  func.func @transform_0(%arg0: i32, %arg1: i32) -> (i32, i32) {
    %c0_i32 = arith.constant 0 : i32
    return %arg0, %arg1 : i32, i32
  }
  func.func @transform_1(%arg0: i32, %arg1: i32) -> (i32, i32) {
    %c0_i32 = arith.constant 0 : i32
    %c0_i32_0 = arith.constant 0 : i32
    return %arg1, %c0_i32 : i32, i32
  }
  func.func @transform_2(%arg0: i32, %arg1: i32) -> (i32, i32) {
    %c0_i32 = arith.constant 0 : i32
    %c0_i32_0 = arith.constant 0 : i32
    %c0_i32_1 = arith.constant 0 : i32
    return %c0_i32, %c0_i32_0 : i32, i32
  }
  func.func @transform_3(%arg0: i32, %arg1: i32) -> (i32, i32) {
    %c0_i32 = arith.constant 0 : i32
    %c0_i32_0 = arith.constant 0 : i32
    return %arg0, %c0_i32 : i32, i32
  }
}

</mosaic_0001>

<llo_original>
// kernel: resized_model_forward.1
$region0: #{resized_model_forward.1}
  #allocation0 [shape = 'u32[]', space=smem, size = 0x4, offset = 0x4, fixed_abs, tag = 'smem constant byte address 0x4 - core index']
  #allocation1 [shape = 'u32[144,128]{1,0:T(1,128)}', space=vmem, size = 0x12000, scoped, tag = 'internal scratch']
  #allocation2 [shape = 'f32[2,128]{1,0:T(2,128)}', space=vmem, size = 0x400, scoped, tag = 'scratch operand']
  %s0 = inlined_call_operand.vmem [shape: bf16[2,1024], index: 0, kind: input, shape index: {}]
  %s1 = inlined_call_operand.hbm [shape: bf16[1024,128], index: 1, kind: input, shape index: {}]
  %s2 = inlined_call_operand.vmem [shape: f32[1,128], index: 2, kind: input, shape index: {}]
  %s3 = inlined_call_operand.hbm [shape: f32[2,128], index: 3, kind: output, shape index: {}]
  %s4 = sld [smem:[#allocation0]]
  $region34: #{resized_model_forward.1} parent=0
    _
  %s6 = ssub.s32 1, %s4
  %s7 = scalar_select 0, %s6, %s4
  $region1: #{resized_model_forward.1} parent=0
    #allocation3 [shape = 'u8[262144]{0}', space=vmem, size = 0x40000, scoped, tag = 'input window, operand 1, single buffered']
    #allocation4 [shape = 's32[1]{0}', space=sflag, size = 0x4, scoped, tag = 'scoped memory for resized_model_forward.1']
    #allocation5 [shape = 's32[1]{0}', space=sflag, size = 0x4, scoped, tag = 'scoped memory for resized_model_forward.1']
    #allocation6 [shape = 'u8[1024]{0}', space=vmem, size = 0x400, scoped, tag = 'output window, operand 0, single buffered']
    %8 = vsyncpa [#allocation4], 0
    %9 = vsyncpa [#allocation5], 0
    // Predicated region
    $region2: #{resized_model_forward.1} parent=1 // pred_check
      _
    $region3: #{resized_model_forward.1} parent=1 // pred_check_branch
      %11 = sbr.rel (0) target = $region5
    $region4: #{resized_model_forward.1} parent=1 // pred_region
      _
    $region5: #{resized_model_forward.1} parent=1 // pred_fallthru
      _
    // Predicated region
    $region6: #{resized_model_forward.1} parent=1 // pred_check
      _
    $region7: #{resized_model_forward.1} parent=1 // pred_check_branch
      %13 = sbr.rel (0) target = $region9
    $region8: #{resized_model_forward.1} parent=1 // pred_region
      %s15 = ssub.s32 8192, 8192
      %16 = vsyncadd [#allocation4], %s15
      %s17 = sshll.u32 [#allocation3], 4
      %s18 = int_to_ptr.vmem [resolvable:$true] %s17
      %23 = dma.hbm_to_vmem [thread:$0]  %s1, 8192, %s18, [#allocation4], 64, 64, 4
    $region9: #{resized_model_forward.1} parent=1 // pred_fallthru
      _
    // Predicated region
    $region10: #{resized_model_forward.1} parent=1 // pred_check
      _
    $region11: #{resized_model_forward.1} parent=1 // pred_check_branch
      %25 = sbr.rel (0) target = $region13
    $region12: #{resized_model_forward.1} parent=1 // pred_region
      _
    $region13: #{resized_model_forward.1} parent=1 // pred_fallthru
      _
    // Predicated region
    $region14: #{resized_model_forward.1} parent=1 // pred_check
      _
    $region15: #{resized_model_forward.1} parent=1 // pred_check_branch
      %27 = sbr.rel (0) target = $region17
    $region16: #{resized_model_forward.1} parent=1 // pred_region
      %28 = dma.done [#allocation4], 8192
    $region17: #{resized_model_forward.1} parent=1 // pred_fallthru
      _
    %p30 = scmp.eq.s32.totalorder 0, 0
    // Predicated region
    $region18: #{resized_model_forward.1} parent=1 // pred_check
      %p31 = pneg %p30
    $region19: #{resized_model_forward.1} parent=1 // pred_check_branch
      %33 = sbr.rel (%p31) target = $region21
    $region20: #{resized_model_forward.1} parent=1 // pred_region
      %34 = vst [vmem:[#allocation2] sm:$0x3] 0.0
    $region21: #{resized_model_forward.1} parent=1 // pred_fallthru
      _
    %v35 = vld [vmem:[#allocation2] sm:$0x3]
    %v36 = vld [vmem:[%s0] sm:$0xff]
    %v37 = vld [vmem:[#allocation3] sm:$0xf]
    %v38 = vld [vmem:[#allocation3 + $0x4] sm:$0xf]
    %v39 = vld [vmem:[#allocation3 + $0x8] sm:$0xf]
    %v40 = vld [vmem:[#allocation3 + $0xc] sm:$0xf]
    %v41 = vld [vmem:[#allocation3 + $0x10] sm:$0xf]
    %v42 = vld [vmem:[#allocation3 + $0x14] sm:$0xf]
    %v43 = vld [vmem:[#allocation3 + $0x18] sm:$0xf]
    %v44 = vld [vmem:[#allocation3 + $0x1c] sm:$0xf]
    %v45 = vld [vmem:[#allocation3 + $0x20] sm:$0xf]
    %v46 = vld [vmem:[#allocation3 + $0x24] sm:$0xf]
    %v47 = vld [vmem:[#allocation3 + $0x28] sm:$0xf]
    %v48 = vld [vmem:[#allocation3 + $0x2c] sm:$0xf]
    %v49 = vld [vmem:[#allocation3 + $0x30] sm:$0xf]
    %v50 = vld [vmem:[#allocation3 + $0x34] sm:$0xf]
    %v51 = vld [vmem:[#allocation3 + $0x38] sm:$0xf]
    %v52 = vld [vmem:[#allocation3 + $0x3c] sm:$0xf]
    %v53 = vld [vmem:[#allocation3 + $0x40] sm:$0xf]
    %v54 = vld [vmem:[#allocation3 + $0x44] sm:$0xf]
    %v55 = vld [vmem:[#allocation3 + $0x48] sm:$0xf]
    %v56 = vld [vmem:[#allocation3 + $0x4c] sm:$0xf]
    %v57 = vld [vmem:[#allocation3 + $0x50] sm:$0xf]
    %v58 = vld [vmem:[#allocation3 + $0x54] sm:$0xf]
    %v59 = vld [vmem:[#allocation3 + $0x58] sm:$0xf]
    %v60 = vld [vmem:[#allocation3 + $0x5c] sm:$0xf]
    %v61 = vld [vmem:[#allocation3 + $0x60] sm:$0xf]
    %v62 = vld [vmem:[#allocation3 + $0x64] sm:$0xf]
    %v63 = vld [vmem:[#allocation3 + $0x68] sm:$0xf]
    %v64 = vld [vmem:[#allocation3 + $0x6c] sm:$0xf]
    %v65 = vld [vmem:[#allocation3 + $0x70] sm:$0xf]
    %v66 = vld [vmem:[#allocation3 + $0x74] sm:$0xf]
    %v67 = vld [vmem:[#allocation3 + $0x78] sm:$0xf]
    %v68 = vld [vmem:[#allocation3 + $0x7c] sm:$0xf]
    %v69 = vld [vmem:[#allocation3 + $0x80] sm:$0xf]
    %v70 = vld [vmem:[#allocation3 + $0x84] sm:$0xf]
    %v71 = vld [vmem:[#allocation3 + $0x88] sm:$0xf]
    %v72 = vld [vmem:[#allocation3 + $0x8c] sm:$0xf]
    %v73 = vld [vmem:[#allocation3 + $0x90] sm:$0xf]
    %v74 = vld [vmem:[#allocation3 + $0x94] sm:$0xf]
    %v75 = vld [vmem:[#allocation3 + $0x98] sm:$0xf]
    %v76 = vld [vmem:[#allocation3 + $0x9c] sm:$0xf]
    %v77 = vld [vmem:[#allocation3 + $0xa0] sm:$0xf]
    %v78 = vld [vmem:[#allocation3 + $0xa4] sm:$0xf]
    %v79 = vld [vmem:[#allocation3 + $0xa8] sm:$0xf]
    %v80 = vld [vmem:[#allocation3 + $0xac] sm:$0xf]
    %v81 = vld [vmem:[#allocation3 + $0xb0] sm:$0xf]
    %v82 = vld [vmem:[#allocation3 + $0xb4] sm:$0xf]
    %v83 = vld [vmem:[#allocation3 + $0xb8] sm:$0xf]
    %v84 = vld [vmem:[#allocation3 + $0xbc] sm:$0xf]
    %v85 = vld [vmem:[#allocation3 + $0xc0] sm:$0xf]
    %v86 = vld [vmem:[#allocation3 + $0xc4] sm:$0xf]
    %v87 = vld [vmem:[#allocation3 + $0xc8] sm:$0xf]
    %v88 = vld [vmem:[#allocation3 + $0xcc] sm:$0xf]
    %v89 = vld [vmem:[#allocation3 + $0xd0] sm:$0xf]
    %v90 = vld [vmem:[#allocation3 + $0xd4] sm:$0xf]
    %v91 = vld [vmem:[#allocation3 + $0xd8] sm:$0xf]
    %v92 = vld [vmem:[#allocation3 + $0xdc] sm:$0xf]
    %v93 = vld [vmem:[#allocation3 + $0xe0] sm:$0xf]
    %v94 = vld [vmem:[#allocation3 + $0xe4] sm:$0xf]
    %v95 = vld [vmem:[#allocation3 + $0xe8] sm:$0xf]
    %v96 = vld [vmem:[#allocation3 + $0xec] sm:$0xf]
    %v97 = vld [vmem:[#allocation3 + $0xf0] sm:$0xf]
    %v98 = vld [vmem:[#allocation3 + $0xf4] sm:$0xf]
    %v99 = vld [vmem:[#allocation3 + $0xf8] sm:$0xf]
    %v100 = vld [vmem:[#allocation3 + $0xfc] sm:$0xf]
    %v101 = vld [vmem:[#allocation3 + $0x100] sm:$0xf]
    %v102 = vld [vmem:[#allocation3 + $0x104] sm:$0xf]
    %v103 = vld [vmem:[#allocation3 + $0x108] sm:$0xf]
    %v104 = vld [vmem:[#allocation3 + $0x10c] sm:$0xf]
    %v105 = vld [vmem:[#allocation3 + $0x110] sm:$0xf]
    %v106 = vld [vmem:[#allocation3 + $0x114] sm:$0xf]
    %v107 = vld [vmem:[#allocation3 + $0x118] sm:$0xf]
    %v108 = vld [vmem:[#allocation3 + $0x11c] sm:$0xf]
    %v109 = vld [vmem:[#allocation3 + $0x120] sm:$0xf]
    %v110 = vld [vmem:[#allocation3 + $0x124] sm:$0xf]
    %v111 = vld [vmem:[#allocation3 + $0x128] sm:$0xf]
    %v112 = vld [vmem:[#allocation3 + $0x12c] sm:$0xf]
    %v113 = vld [vmem:[#allocation3 + $0x130] sm:$0xf]
    %v114 = vld [vmem:[#allocation3 + $0x134] sm:$0xf]
    %v115 = vld [vmem:[#allocation3 + $0x138] sm:$0xf]
    %v116 = vld [vmem:[#allocation3 + $0x13c] sm:$0xf]
    %v117 = vld [vmem:[#allocation3 + $0x140] sm:$0xf]
    %v118 = vld [vmem:[#allocation3 + $0x144] sm:$0xf]
    %v119 = vld [vmem:[#allocation3 + $0x148] sm:$0xf]
    %v120 = vld [vmem:[#allocation3 + $0x14c] sm:$0xf]
    %v121 = vld [vmem:[#allocation3 + $0x150] sm:$0xf]
    %v122 = vld [vmem:[#allocation3 + $0x154] sm:$0xf]
    %v123 = vld [vmem:[#allocation3 + $0x158] sm:$0xf]
    %v124 = vld [vmem:[#allocation3 + $0x15c] sm:$0xf]
    %v125 = vld [vmem:[#allocation3 + $0x160] sm:$0xf]
    %v126 = vld [vmem:[#allocation3 + $0x164] sm:$0xf]
    %v127 = vld [vmem:[#allocation3 + $0x168] sm:$0xf]
    %v128 = vld [vmem:[#allocation3 + $0x16c] sm:$0xf]
    %v129 = vld [vmem:[#allocation3 + $0x170] sm:$0xf]
    %v130 = vld [vmem:[#allocation3 + $0x174] sm:$0xf]
    %v131 = vld [vmem:[#allocation3 + $0x178] sm:$0xf]
    %v132 = vld [vmem:[#allocation3 + $0x17c] sm:$0xf]
    %v133 = vld [vmem:[#allocation3 + $0x180] sm:$0xf]
    %v134 = vld [vmem:[#allocation3 + $0x184] sm:$0xf]
    %v135 = vld [vmem:[#allocation3 + $0x188] sm:$0xf]
    %v136 = vld [vmem:[#allocation3 + $0x18c] sm:$0xf]
    %v137 = vld [vmem:[#allocation3 + $0x190] sm:$0xf]
    %v138 = vld [vmem:[#allocation3 + $0x194] sm:$0xf]
    %v139 = vld [vmem:[#allocation3 + $0x198] sm:$0xf]
    %v140 = vld [vmem:[#allocation3 + $0x19c] sm:$0xf]
    %v141 = vld [vmem:[#allocation3 + $0x1a0] sm:$0xf]
    %v142 = vld [vmem:[#allocation3 + $0x1a4] sm:$0xf]
    %v143 = vld [vmem:[#allocation3 + $0x1a8] sm:$0xf]
    %v144 = vld [vmem:[#allocation3 + $0x1ac] sm:$0xf]
    %v145 = vld [vmem:[#allocation3 + $0x1b0] sm:$0xf]
    %v146 = vld [vmem:[#allocation3 + $0x1b4] sm:$0xf]
    %v147 = vld [vmem:[#allocation3 + $0x1b8] sm:$0xf]
    %v148 = vld [vmem:[#allocation3 + $0x1bc] sm:$0xf]
    %v149 = vld [vmem:[#allocation3 + $0x1c0] sm:$0xf]
    %v150 = vld [vmem:[#allocation3 + $0x1c4] sm:$0xf]
    %v151 = vld [vmem:[#allocation3 + $0x1c8] sm:$0xf]
    %v152 = vld [vmem:[#allocation3 + $0x1cc] sm:$0xf]
    %v153 = vld [vmem:[#allocation3 + $0x1d0] sm:$0xf]
    %v154 = vld [vmem:[#allocation3 + $0x1d4] sm:$0xf]
    %v155 = vld [vmem:[#allocation3 + $0x1d8] sm:$0xf]
    %v156 = vld [vmem:[#allocation3 + $0x1dc] sm:$0xf]
    %v157 = vld [vmem:[#allocation3 + $0x1e0] sm:$0xf]
    %v158 = vld [vmem:[#allocation3 + $0x1e4] sm:$0xf]
    %v159 = vld [vmem:[#allocation3 + $0x1e8] sm:$0xf]
    %v160 = vld [vmem:[#allocation3 + $0x1ec] sm:$0xf]
    %v161 = vld [vmem:[#allocation3 + $0x1f0] sm:$0xf]
    %v162 = vld [vmem:[#allocation3 + $0x1f4] sm:$0xf]
    %v163 = vld [vmem:[#allocation3 + $0x1f8] sm:$0xf]
    %v164 = vld [vmem:[#allocation3 + $0x1fc] sm:$0xf]
    %v166 = vcombine.high %v36, %v36
    %v168 = vunpack.c.l.s4 1966171168
    %v169 = vunpack.c.0.s8 %v168
    %v170 = vlaneseq
    %v171 = vshrl.u32 %v170, 7
    %v172 = vsub.s32 %v169, %v171
    %v173 = vrot.slane %v36, %v172
    %v175 = vunpack.c.l.s4 1966171168
    %v176 = vunpack.c.0.s8 %v175
    %v177 = vlaneseq
    %v178 = vshrl.u32 %v177, 7
    %v179 = vsub.s32 %v176, %v178
    %v180 = vrot.slane %v166, %v179
    %v181 = vcombine.high %v173, %v173
    %v182 = vcombine.high %v180, %v180
    %v184 = vunpack.c.l.s4 1966171168
    %v185 = vunpack.c.0.s8 %v184
    %v186 = vlaneseq
    %v187 = vshrl.u32 %v186, 7
    %v188 = vsub.s32 %v185, %v187
    %v189 = vrot.slane %v173, %v188
    %v191 = vunpack.c.l.s4 1966171168
    %v192 = vunpack.c.0.s8 %v191
    %v193 = vlaneseq
    %v194 = vshrl.u32 %v193, 7
    %v195 = vsub.s32 %v192, %v194
    %v196 = vrot.slane %v180, %v195
    %v198 = vunpack.c.l.s4 1966171168
    %v199 = vunpack.c.0.s8 %v198
    %v200 = vlaneseq
    %v201 = vshrl.u32 %v200, 7
    %v202 = vsub.s32 %v199, %v201
    %v203 = vrot.slane %v181, %v202
    %v205 = vunpack.c.l.s4 1966171168
    %v206 = vunpack.c.0.s8 %v205
    %v207 = vlaneseq
    %v208 = vshrl.u32 %v207, 7
    %v209 = vsub.s32 %v206, %v208
    %v210 = vrot.slane %v182, %v209
    %v211 = vcombine.high %v189, %v189
    %v212 = vcombine.high %v196, %v196
    %v213 = vcombine.high %v203, %v203
    %v214 = vcombine.high %v210, %v210
    %v351 = vunpack.c.l.b16 %v37
    %v352 = vunpack.c.l.b16 %v38
    %v353 = vunpack.c.l.b16 %v39
    %v354 = vunpack.c.l.b16 %v40
    %v355 = vunpack.c.l.b16 %v41
    %v356 = vunpack.c.l.b16 %v42
    %v357 = vunpack.c.l.b16 %v43
    %v358 = vunpack.c.l.b16 %v44
    %v359 = vunpack.c.l.b16 %v45
    %v360 = vunpack.c.l.b16 %v46
    %v361 = vunpack.c.l.b16 %v47
    %v362 = vunpack.c.l.b16 %v48
    %v363 = vunpack.c.l.b16 %v49
    %v364 = vunpack.c.l.b16 %v50
    %v365 = vunpack.c.l.b16 %v51
    %v366 = vunpack.c.l.b16 %v52
    %v367 = vunpack.c.l.b16 %v53
    %v368 = vunpack.c.l.b16 %v54
    %v369 = vunpack.c.l.b16 %v55
    %v370 = vunpack.c.l.b16 %v56
    %v371 = vunpack.c.l.b16 %v57
    %v372 = vunpack.c.l.b16 %v58
    %v373 = vunpack.c.l.b16 %v59
    %v374 = vunpack.c.l.b16 %v60
    %v375 = vunpack.c.l.b16 %v61
    %v376 = vunpack.c.l.b16 %v62
    %v377 = vunpack.c.l.b16 %v63
    %v378 = vunpack.c.l.b16 %v64
    %v379 = vunpack.c.l.b16 %v65
    %v380 = vunpack.c.l.b16 %v66
    %v381 = vunpack.c.l.b16 %v67
    %v382 = vunpack.c.l.b16 %v68
    %v383 = vunpack.c.l.b16 %v69
    %v384 = vunpack.c.l.b16 %v70
    %v385 = vunpack.c.l.b16 %v71
    %v386 = vunpack.c.l.b16 %v72
    %v387 = vunpack.c.l.b16 %v73
    %v388 = vunpack.c.l.b16 %v74
    %v389 = vunpack.c.l.b16 %v75
    %v390 = vunpack.c.l.b16 %v76
    %v391 = vunpack.c.l.b16 %v77
    %v392 = vunpack.c.l.b16 %v78
    %v393 = vunpack.c.l.b16 %v79
    %v394 = vunpack.c.l.b16 %v80
    %v395 = vunpack.c.l.b16 %v81
    %v396 = vunpack.c.l.b16 %v82
    %v397 = vunpack.c.l.b16 %v83
    %v398 = vunpack.c.l.b16 %v84
    %v399 = vunpack.c.l.b16 %v85
    %v400 = vunpack.c.l.b16 %v86
    %v401 = vunpack.c.l.b16 %v87
    %v402 = vunpack.c.l.b16 %v88
    %v403 = vunpack.c.l.b16 %v89
    %v404 = vunpack.c.l.b16 %v90
    %v405 = vunpack.c.l.b16 %v91
    %v406 = vunpack.c.l.b16 %v92
    %v407 = vunpack.c.l.b16 %v93
    %v408 = vunpack.c.l.b16 %v94
    %v409 = vunpack.c.l.b16 %v95
    %v410 = vunpack.c.l.b16 %v96
    %v411 = vunpack.c.l.b16 %v97
    %v412 = vunpack.c.l.b16 %v98
    %v413 = vunpack.c.l.b16 %v99
    %v414 = vunpack.c.l.b16 %v100
    %v415 = vunpack.c.l.b16 %v101
    %v416 = vunpack.c.l.b16 %v102
    %v417 = vunpack.c.l.b16 %v103
    %v418 = vunpack.c.l.b16 %v104
    %v419 = vunpack.c.l.b16 %v105
    %v420 = vunpack.c.l.b16 %v106
    %v421 = vunpack.c.l.b16 %v107
    %v422 = vunpack.c.l.b16 %v108
    %v423 = vunpack.c.l.b16 %v109
    %v424 = vunpack.c.l.b16 %v110
    %v425 = vunpack.c.l.b16 %v111
    %v426 = vunpack.c.l.b16 %v112
    %v427 = vunpack.c.l.b16 %v113
    %v428 = vunpack.c.l.b16 %v114
    %v429 = vunpack.c.l.b16 %v115
    %v430 = vunpack.c.l.b16 %v116
    %v431 = vunpack.c.l.b16 %v117
    %v432 = vunpack.c.l.b16 %v118
    %v433 = vunpack.c.l.b16 %v119
    %v434 = vunpack.c.l.b16 %v120
    %v435 = vunpack.c.l.b16 %v121
    %v436 = vunpack.c.l.b16 %v122
    %v437 = vunpack.c.l.b16 %v123
    %v438 = vunpack.c.l.b16 %v124
    %v439 = vunpack.c.l.b16 %v125
    %v440 = vunpack.c.l.b16 %v126
    %v441 = vunpack.c.l.b16 %v127
    %v442 = vunpack.c.l.b16 %v128
    %v443 = vunpack.c.l.b16 %v129
    %v444 = vunpack.c.l.b16 %v130
    %v445 = vunpack.c.l.b16 %v131
    %v446 = vunpack.c.l.b16 %v132
    %v447 = vunpack.c.l.b16 %v133
    %v448 = vunpack.c.l.b16 %v134
    %v449 = vunpack.c.l.b16 %v135
    %v450 = vunpack.c.l.b16 %v136
    %v451 = vunpack.c.l.b16 %v137
    %v452 = vunpack.c.l.b16 %v138
    %v453 = vunpack.c.l.b16 %v139
    %v454 = vunpack.c.l.b16 %v140
    %v455 = vunpack.c.l.b16 %v141
    %v456 = vunpack.c.l.b16 %v142
    %v457 = vunpack.c.l.b16 %v143
    %v458 = vunpack.c.l.b16 %v144
    %v459 = vunpack.c.l.b16 %v145
    %v460 = vunpack.c.l.b16 %v146
    %v461 = vunpack.c.l.b16 %v147
    %v462 = vunpack.c.l.b16 %v148
    %v463 = vunpack.c.l.b16 %v149
    %v464 = vunpack.c.l.b16 %v150
    %v465 = vunpack.c.l.b16 %v151
    %v466 = vunpack.c.l.b16 %v152
    %v467 = vunpack.c.l.b16 %v153
    %v468 = vunpack.c.l.b16 %v154
    %v469 = vunpack.c.l.b16 %v155
    %v470 = vunpack.c.l.b16 %v156
    %v471 = vunpack.c.l.b16 %v157
    %v472 = vunpack.c.l.b16 %v158
    %v473 = vunpack.c.l.b16 %v159
    %v474 = vunpack.c.l.b16 %v160
    %v475 = vunpack.c.l.b16 %v161
    %v476 = vunpack.c.l.b16 %v162
    %v477 = vunpack.c.l.b16 %v163
    %v478 = vunpack.c.l.b16 %v164
    %v479 = vpack.c.b16 %v352, %v351
    %v480 = vpack.c.b16 %v354, %v353
    %v481 = vpack.c.b16 %v356, %v355
    %v482 = vpack.c.b16 %v358, %v357
    %v483 = vpack.c.b16 %v360, %v359
    %v484 = vpack.c.b16 %v362, %v361
    %v485 = vpack.c.b16 %v364, %v363
    %v486 = vpack.c.b16 %v366, %v365
    %v487 = vpack.c.b16 %v368, %v367
    %v488 = vpack.c.b16 %v370, %v369
    %v489 = vpack.c.b16 %v372, %v371
    %v490 = vpack.c.b16 %v374, %v373
    %v491 = vpack.c.b16 %v376, %v375
    %v492 = vpack.c.b16 %v378, %v377
    %v493 = vpack.c.b16 %v380, %v379
    %v494 = vpack.c.b16 %v382, %v381
    %v495 = vpack.c.b16 %v384, %v383
    %v496 = vpack.c.b16 %v386, %v385
    %v497 = vpack.c.b16 %v388, %v387
    %v498 = vpack.c.b16 %v390, %v389
    %v499 = vpack.c.b16 %v392, %v391
    %v500 = vpack.c.b16 %v394, %v393
    %v501 = vpack.c.b16 %v396, %v395
    %v502 = vpack.c.b16 %v398, %v397
    %v503 = vpack.c.b16 %v400, %v399
    %v504 = vpack.c.b16 %v402, %v401
    %v505 = vpack.c.b16 %v404, %v403
    %v506 = vpack.c.b16 %v406, %v405
    %v507 = vpack.c.b16 %v408, %v407
    %v508 = vpack.c.b16 %v410, %v409
    %v509 = vpack.c.b16 %v412, %v411
    %v510 = vpack.c.b16 %v414, %v413
    %v511 = vpack.c.b16 %v416, %v415
    %v512 = vpack.c.b16 %v418, %v417
    %v513 = vpack.c.b16 %v420, %v419
    %v514 = vpack.c.b16 %v422, %v421
    %v515 = vpack.c.b16 %v424, %v423
    %v516 = vpack.c.b16 %v426, %v425
    %v517 = vpack.c.b16 %v428, %v427
    %v518 = vpack.c.b16 %v430, %v429
    %v519 = vpack.c.b16 %v432, %v431
    %v520 = vpack.c.b16 %v434, %v433
    %v521 = vpack.c.b16 %v436, %v435
    %v522 = vpack.c.b16 %v438, %v437
    %v523 = vpack.c.b16 %v440, %v439
    %v524 = vpack.c.b16 %v442, %v441
    %v525 = vpack.c.b16 %v444, %v443
    %v526 = vpack.c.b16 %v446, %v445
    %v527 = vpack.c.b16 %v448, %v447
    %v528 = vpack.c.b16 %v450, %v449
    %v529 = vpack.c.b16 %v452, %v451
    %v530 = vpack.c.b16 %v454, %v453
    %v531 = vpack.c.b16 %v456, %v455
    %v532 = vpack.c.b16 %v458, %v457
    %v533 = vpack.c.b16 %v460, %v459
    %v534 = vpack.c.b16 %v462, %v461
    %v535 = vpack.c.b16 %v464, %v463
    %v536 = vpack.c.b16 %v466, %v465
    %v537 = vpack.c.b16 %v468, %v467
    %v538 = vpack.c.b16 %v470, %v469
    %v539 = vpack.c.b16 %v472, %v471
    %v540 = vpack.c.b16 %v474, %v473
    %v541 = vpack.c.b16 %v476, %v475
    %v542 = vpack.c.b16 %v478, %v477
    %607 = vmatprep.subr.bf16.mxu0 0
    %608 = vmatpush1.bf16.msra.mxu0 %v486
    %609 = vmatprep.subr.bf16.mxu0 0
    %610 = vmatpush1.bf16.msra.mxu0 %v485
    %611 = vmatprep.subr.bf16.mxu0 0
    %612 = vmatpush1.bf16.msra.mxu0 %v484
    %613 = vmatprep.subr.bf16.mxu0 0
    %614 = vmatpush1.bf16.msra.mxu0 %v483
    %615 = vmatprep.subr.bf16.mxu0 0
    %616 = vmatpush1.bf16.msra.mxu0 %v482
    %617 = vmatprep.subr.bf16.mxu0 0
    %618 = vmatpush1.bf16.msra.mxu0 %v481
    %619 = vmatprep.subr.bf16.mxu0 0
    %620 = vmatpush1.bf16.msra.mxu0 %v480
    %621 = vmatprep.subr.bf16.mxu0 0
    %622 = vmatpush1.bf16.msra.mxu0 %v479
    %623 = vmatprep.subr.bf16.mxu0 0
    %624 = vmatpush2.bf16.msra.mxu0 %v494
    %625 = vmatprep.subr.bf16.mxu0 0
    %626 = vmatpush2.bf16.msra.mxu0 %v493
    %627 = vmatprep.subr.bf16.mxu0 0
    %628 = vmatpush2.bf16.msra.mxu0 %v492
    %629 = vmatprep.subr.bf16.mxu0 0
    %630 = vmatpush2.bf16.msra.mxu0 %v491
    %631 = vmatprep.subr.bf16.mxu0 0
    %632 = vmatpush2.bf16.msra.mxu0 %v490
    %633 = vmatprep.subr.bf16.mxu0 0
    %634 = vmatpush2.bf16.msra.mxu0 %v489
    %635 = vmatprep.subr.bf16.mxu0 0
    %636 = vmatpush2.bf16.msra.mxu0 %v488
    %637 = vmatprep.subr.bf16.mxu0 0
    %638 = vmatpush2.bf16.msra.mxu0 %v487
    %639 = vmatprep.mubr.bf16.mxu0 %v203
    %640 = vmatmul.mubr.bf16.gmra.mxu0 %v189
    %v641 = vpop.f32.mrf.mxu0
    %v642 = vadd.f32 0.0, %v641
    %v643 = vpop.f32.mrf.mxu0
    %v644 = vpop.f32.mrf.mxu0
    %v645 = vpop.f32.mrf.mxu0
    %646 = vdwg.mxu0
    %647 = vmatprep.subr.bf16.mxu0 0
    %648 = vmatpush1.bf16.msra.mxu0 %v502
    %649 = vmatprep.subr.bf16.mxu0 0
    %650 = vmatpush1.bf16.msra.mxu0 %v501
    %651 = vmatprep.subr.bf16.mxu0 0
    %652 = vmatpush1.bf16.msra.mxu0 %v500
    %653 = vmatprep.subr.bf16.mxu0 0
    %654 = vmatpush1.bf16.msra.mxu0 %v499
    %655 = vmatprep.subr.bf16.mxu0 0
    %656 = vmatpush1.bf16.msra.mxu0 %v498
    %657 = vmatprep.subr.bf16.mxu0 0
    %658 = vmatpush1.bf16.msra.mxu0 %v497
    %659 = vmatprep.subr.bf16.mxu0 0
    %660 = vmatpush1.bf16.msra.mxu0 %v496
    %661 = vmatprep.subr.bf16.mxu0 0
    %662 = vmatpush1.bf16.msra.mxu0 %v495
    %663 = vmatprep.subr.bf16.mxu0 0
    %664 = vmatpush2.bf16.msra.mxu0 %v510
    %665 = vmatprep.subr.bf16.mxu0 0
    %666 = vmatpush2.bf16.msra.mxu0 %v509
    %667 = vmatprep.subr.bf16.mxu0 0
    %668 = vmatpush2.bf16.msra.mxu0 %v508
    %669 = vmatprep.subr.bf16.mxu0 0
    %670 = vmatpush2.bf16.msra.mxu0 %v507
    %671 = vmatprep.subr.bf16.mxu0 0
    %672 = vmatpush2.bf16.msra.mxu0 %v506
    %673 = vmatprep.subr.bf16.mxu0 0
    %674 = vmatpush2.bf16.msra.mxu0 %v505
    %675 = vmatprep.subr.bf16.mxu0 0
    %676 = vmatpush2.bf16.msra.mxu0 %v504
    %677 = vmatprep.subr.bf16.mxu0 0
    %678 = vmatpush2.bf16.msra.mxu0 %v503
    %679 = vmatprep.mubr.bf16.mxu0 %v213
    %680 = vmatmul.mubr.bf16.gmra.mxu0 %v211
    %v681 = vpop.f32.mrf.mxu0
    %v682 = vadd.f32 %v642, %v681
    %v683 = vpop.f32.mrf.mxu0
    %v684 = vpop.f32.mrf.mxu0
    %v685 = vpop.f32.mrf.mxu0
    %686 = vdwg.mxu0
    %687 = vmatprep.subr.bf16.mxu0 0
    %688 = vmatpush1.bf16.msra.mxu0 %v518
    %689 = vmatprep.subr.bf16.mxu0 0
    %690 = vmatpush1.bf16.msra.mxu0 %v517
    %691 = vmatprep.subr.bf16.mxu0 0
    %692 = vmatpush1.bf16.msra.mxu0 %v516
    %693 = vmatprep.subr.bf16.mxu0 0
    %694 = vmatpush1.bf16.msra.mxu0 %v515
    %695 = vmatprep.subr.bf16.mxu0 0
    %696 = vmatpush1.bf16.msra.mxu0 %v514
    %697 = vmatprep.subr.bf16.mxu0 0
    %698 = vmatpush1.bf16.msra.mxu0 %v513
    %699 = vmatprep.subr.bf16.mxu0 0
    %700 = vmatpush1.bf16.msra.mxu0 %v512
    %701 = vmatprep.subr.bf16.mxu0 0
    %702 = vmatpush1.bf16.msra.mxu0 %v511
    %703 = vmatprep.subr.bf16.mxu0 0
    %704 = vmatpush2.bf16.msra.mxu0 %v526
    %705 = vmatprep.subr.bf16.mxu0 0
    %706 = vmatpush2.bf16.msra.mxu0 %v525
    %707 = vmatprep.subr.bf16.mxu0 0
    %708 = vmatpush2.bf16.msra.mxu0 %v524
    %709 = vmatprep.subr.bf16.mxu0 0
    %710 = vmatpush2.bf16.msra.mxu0 %v523
    %711 = vmatprep.subr.bf16.mxu0 0
    %712 = vmatpush2.bf16.msra.mxu0 %v522
    %713 = vmatprep.subr.bf16.mxu0 0
    %714 = vmatpush2.bf16.msra.mxu0 %v521
    %715 = vmatprep.subr.bf16.mxu0 0
    %716 = vmatpush2.bf16.msra.mxu0 %v520
    %717 = vmatprep.subr.bf16.mxu0 0
    %718 = vmatpush2.bf16.msra.mxu0 %v519
    %719 = vmatprep.mubr.bf16.mxu0 %v210
    %720 = vmatmul.mubr.bf16.gmra.mxu0 %v196
    %v721 = vpop.f32.mrf.mxu0
    %v722 = vadd.f32 %v682, %v721
    %v723 = vpop.f32.mrf.mxu0
    %v724 = vpop.f32.mrf.mxu0
    %v725 = vpop.f32.mrf.mxu0
    %726 = vdwg.mxu0
    %727 = vmatprep.subr.bf16.mxu0 0
    %728 = vmatpush1.bf16.msra.mxu0 %v534
    %729 = vmatprep.subr.bf16.mxu0 0
    %730 = vmatpush1.bf16.msra.mxu0 %v533
    %731 = vmatprep.subr.bf16.mxu0 0
    %732 = vmatpush1.bf16.msra.mxu0 %v532
    %733 = vmatprep.subr.bf16.mxu0 0
    %734 = vmatpush1.bf16.msra.mxu0 %v531
    %735 = vmatprep.subr.bf16.mxu0 0
    %736 = vmatpush1.bf16.msra.mxu0 %v530
    %737 = vmatprep.subr.bf16.mxu0 0
    %738 = vmatpush1.bf16.msra.mxu0 %v529
    %739 = vmatprep.subr.bf16.mxu0 0
    %740 = vmatpush1.bf16.msra.mxu0 %v528
    %741 = vmatprep.subr.bf16.mxu0 0
    %742 = vmatpush1.bf16.msra.mxu0 %v527
    %743 = vmatprep.subr.bf16.mxu0 0
    %744 = vmatpush2.bf16.msra.mxu0 %v542
    %745 = vmatprep.subr.bf16.mxu0 0
    %746 = vmatpush2.bf16.msra.mxu0 %v541
    %747 = vmatprep.subr.bf16.mxu0 0
    %748 = vmatpush2.bf16.msra.mxu0 %v540
    %749 = vmatprep.subr.bf16.mxu0 0
    %750 = vmatpush2.bf16.msra.mxu0 %v539
    %751 = vmatprep.subr.bf16.mxu0 0
    %752 = vmatpush2.bf16.msra.mxu0 %v538
    %753 = vmatprep.subr.bf16.mxu0 0
    %754 = vmatpush2.bf16.msra.mxu0 %v537
    %755 = vmatprep.subr.bf16.mxu0 0
    %756 = vmatpush2.bf16.msra.mxu0 %v536
    %757 = vmatprep.subr.bf16.mxu0 0
    %758 = vmatpush2.bf16.msra.mxu0 %v535
    %759 = vmatprep.mubr.bf16.mxu0 %v214
    %760 = vmatmul.mubr.bf16.gmra.mxu0 %v212
    %v761 = vpop.f32.mrf.mxu0
    %v762 = vadd.f32 %v722, %v761
    %v763 = vpop.f32.mrf.mxu0
    %v764 = vpop.f32.mrf.mxu0
    %v765 = vpop.f32.mrf.mxu0
    %766 = vdwg.mxu0
    %v767 = vadd.f32 %v35, %v762
    %768 = vst [vmem:[#allocation2] sm:$0x3] %v767
    // Predicated region
    $region22: #{resized_model_forward.1} parent=1 // pred_check
      %p769 = pneg %p30
    $region23: #{resized_model_forward.1} parent=1 // pred_check_branch
      %771 = sbr.rel (%p769) target = $region25
    $region24: #{resized_model_forward.1} parent=1 // pred_region
      %v772 = vld [vmem:[#allocation2] sm:$0x3]
      %v773 = vld [vmem:[%s2] sm:$0x1]
      %v775 = vlaneseq
      %v776 = vshrl.u32 %v775, 7
      %v777 = vsub.s32 0, %v776
      %v778 = vrot.slane %v773, %v777
      %v780 = vadd.f32 %v772, %v778
      %781 = vst [vmem:[#allocation6] sm:$0x3] %v780
    $region25: #{resized_model_forward.1} parent=1 // pred_fallthru
      _
    // Predicated region
    $region26: #{resized_model_forward.1} parent=1 // pred_check
      _
    $region27: #{resized_model_forward.1} parent=1 // pred_check_branch
      %783 = sbr.rel (0) target = $region29
    $region28: #{resized_model_forward.1} parent=1 // pred_region
      %s785 = ssub.s32 32, 32
      %786 = vsyncadd [#allocation5], %s785
      %s788 = sshll.u32 [#allocation6], 4
      %s789 = int_to_ptr.vmem [resolvable:$true] %s788
      %791 = dma.vmem_to_hbm [thread:$0]  %s789, 32, %s3, [#allocation5]
    $region29: #{resized_model_forward.1} parent=1 // pred_fallthru
      _
    // Predicated region
    $region30: #{resized_model_forward.1} parent=1 // pred_check
      _
    $region31: #{resized_model_forward.1} parent=1 // pred_check_branch
      %793 = sbr.rel (0) target = $region33
    $region32: #{resized_model_forward.1} parent=1 // pred_region
      %794 = dma.done [#allocation5], 32
    $region33: #{resized_model_forward.1} parent=1 // pred_fallthru
      _
    %795 = vsyncpa [#allocation4], 1
    %796 = vsyncpa [#allocation5], 1

</llo_original>
